<compile_context>
chip_gen: v6e
topology: v6e:2x2x1
jax: 0.10.0
libtpu: 0.0.40
codegen_flags: <defaults>
</compile_context>

<pallas_src>
import jax
import jax.numpy as jnp
from jax.experimental import pallas as pl
from jax.experimental.pallas import tpu as pltpu

IN_FEATURES = 2
OUT_FEATURES = 1

LANE = 128            # TPU lane width
SUBLANE = 8           # f32 sublane packing
MAX_TILE_ROWS = 2048  # (2,2048,128) in + (1,2048,128) out ~= 3 MiB HBM / step


def _round_up(v, m):
    return ((v + m - 1) // m) * m


def _linear_kernel(params_ref, xt_ref, o_ref):
    # params_ref: (3,) f32 in SMEM -> [w0, w1, b]
    # xt_ref:     (2, R, 128) f32 in VMEM (feature 0 / feature 1 slabs)
    # o_ref:      (1, R, 128) f32 in VMEM (lane+sublane dense output)
    w0 = params_ref[0]
    w1 = params_ref[1]
    b = params_ref[2]
    o_ref[0] = w0 * xt_ref[0] + w1 * xt_ref[1] + b


@jax.jit
def predictor_forward(x, weight, bias):
    """x: (N, 2) f32, weight: (1, 2) f32, bias: (1,) f32 -> (N, 1) f32."""
    n = x.shape[0]

    # Batch packed as rows of 128 lanes; rows padded to the sublane multiple.
    n_rows = _round_up(max(pl.cdiv(n, LANE), 1), SUBLANE)

    # Tile sizing: cap per-step rows at MAX_TILE_ROWS (~3 MiB HBM traffic) and
    # keep the grid >= 2 whenever possible (v7x dual-TensorCore split).
    if n_rows > MAX_TILE_ROWS:
        tile_rows = MAX_TILE_ROWS
    elif n_rows >= 2 * SUBLANE:
        tile_rows = _round_up(pl.cdiv(n_rows, 2), SUBLANE)
    else:
        tile_rows = n_rows
    n_rows_pad = _round_up(n_rows, tile_rows)
    n_pad = n_rows_pad * LANE
    grid = (n_rows_pad // tile_rows,)

    # Feature-major layout + zero pad, then a free row-major reshape into the
    # dense (2, n_rows_pad, 128) slab the kernel consumes.
    xt = jnp.zeros((IN_FEATURES, n_pad), jnp.float32).at[:, :n].set(x.T)
    xt = xt.reshape(IN_FEATURES, n_rows_pad, LANE)

    # Scalar parameters for SMEM: [w0, w1, b].
    params = jnp.concatenate(
        [weight.reshape(-1), bias.reshape(-1)]
    ).astype(jnp.float32)

    out_pad = pl.pallas_call(
        _linear_kernel,
        out_shape=jax.ShapeDtypeStruct(
            (OUT_FEATURES, n_rows_pad, LANE), jnp.float32
        ),
        grid=grid,
        in_specs=[
            pl.BlockSpec(memory_space=pltpu.MemorySpace.SMEM),          # params
            pl.BlockSpec((IN_FEATURES, tile_rows, LANE),
                         lambda i: (0, i, 0)),                          # x slab
        ],
        out_specs=pl.BlockSpec((OUT_FEATURES, tile_rows, LANE),
                               lambda i: (0, i, 0)),
        compiler_params=pltpu.CompilerParams(
            dimension_semantics=("parallel",)
        ),
    )(params, xt)

    # Free reshape + slice back to (N, 1); padded lanes (value = b) dropped.
    return out_pad.reshape(-1)[:n].reshape(n, OUT_FEATURES)


if __name__ == "__main__":
    key = jax.random.PRNGKey(0)
    k_x, k_w, k_b, k_x2 = jax.random.split(key, 4)

    # Deterministic parameter init mimicking nn.Linear(2, 1):
    # uniform(-1/sqrt(in_features), 1/sqrt(in_features)).
    bound = 1.0 / jnp.sqrt(jnp.float32(IN_FEATURES))
    weight = jax.random.uniform(
        k_w, (OUT_FEATURES, IN_FEATURES), jnp.float32, -bound, bound
    )
    bias = jax.random.uniform(k_b, (OUT_FEATURES,), jnp.float32, -bound, bound)

    # Small batch consistent with the module's forward: (N, 2), single tile.
    x = jax.random.normal(k_x, (8, IN_FEATURES), jnp.float32)
    out = jax.block_until_ready(predictor_forward(x, weight, bias))
    ref = x @ weight.T + bias
    assert out.shape == (8, OUT_FEATURES), out.shape
    assert jnp.allclose(out, ref, atol=1e-5, rtol=1e-5)

    # Ragged batch exercising the multi-tile (grid >= 2) path.
    x2 = jax.random.normal(k_x2, (2100, IN_FEATURES), jnp.float32)
    out2 = jax.block_until_ready(predictor_forward(x2, weight, bias))
    ref2 = x2 @ weight.T + bias
    assert out2.shape == (2100, OUT_FEATURES), out2.shape
    assert jnp.allclose(out2, ref2, atol=1e-5, rtol=1e-5)

    print("KERNEL_OK")
</pallas_src>

<mosaic_0001>
module attributes {stable_mosaic.version = 11 : i64} {
  func.func @_linear_kernel(%arg0: i32, %arg1: memref<3xf32, #tpu.memory_space<smem>>, %arg2: memref<2x8x128xf32, #tpu.memory_space<vmem>>, %arg3: memref<1x8x128xf32, #tpu.memory_space<vmem>>) attributes {dimension_semantics = [#tpu.dimension_semantics<parallel>], iteration_bounds = array<i64: 1>, scalar_prefetch = 0 : i64, scratch_operands = 0 : i64, tpu.core_type = #tpu.core_type<tc>, window_params = [{transform_indices = @transform_0, window_bounds = array<i64: 3>}, {transform_indices = @transform_1, window_bounds = array<i64: 2, 8, 128>}, {transform_indices = @transform_2, window_bounds = array<i64: 1, 8, 128>}]} {
    %c0 = arith.constant 0 : index
    %0 = memref.load %arg1[%c0] : memref<3xf32, #tpu.memory_space<smem>>
    %c1 = arith.constant 1 : index
    %1 = memref.load %arg1[%c1] : memref<3xf32, #tpu.memory_space<smem>>
    %c2 = arith.constant 2 : index
    %2 = memref.load %arg1[%c2] : memref<3xf32, #tpu.memory_space<smem>>
    %c0_0 = arith.constant 0 : index
    %c0_1 = arith.constant 0 : index
    %c0_2 = arith.constant 0 : index
    %3 = vector.load %arg2[%c0_0, %c0_1, %c0_2] : memref<2x8x128xf32, #tpu.memory_space<vmem>>, vector<1x8x128xf32>
    %4 = vector.shape_cast %3 : vector<1x8x128xf32> to vector<8x128xf32>
    %5 = vector.broadcast %0 : f32 to vector<8x128xf32>
    %6 = arith.mulf %5, %4 : vector<8x128xf32>
    %c1_3 = arith.constant 1 : index
    %c0_4 = arith.constant 0 : index
    %c0_5 = arith.constant 0 : index
    %7 = vector.load %arg2[%c1_3, %c0_4, %c0_5] : memref<2x8x128xf32, #tpu.memory_space<vmem>>, vector<1x8x128xf32>
    %8 = vector.shape_cast %7 : vector<1x8x128xf32> to vector<8x128xf32>
    %9 = vector.broadcast %1 : f32 to vector<8x128xf32>
    %10 = arith.mulf %9, %8 : vector<8x128xf32>
    %11 = arith.addf %6, %10 : vector<8x128xf32>
    %12 = vector.broadcast %2 : f32 to vector<8x128xf32>
    %13 = arith.addf %11, %12 : vector<8x128xf32>
    %c0_6 = arith.constant 0 : index
    %c0_7 = arith.constant 0 : index
    %c0_8 = arith.constant 0 : index
    %14 = vector.load %arg3[%c0_6, %c0_7, %c0_8] : memref<1x8x128xf32, #tpu.memory_space<vmem>>, vector<1x8x128xf32>
    %15 = vector.shape_cast %14 : vector<1x8x128xf32> to vector<8x128xf32>
    %16 = vector.shape_cast %13 : vector<8x128xf32> to vector<1x8x128xf32>
    tpu.vector_store %arg3[%c0_6, %c0_7, %c0_8], %16 {strides = array<i32>} : memref<1x8x128xf32, #tpu.memory_space<vmem>>, vector<1x8x128xf32>,
    return
  }
  func.func @transform_0(%arg0: i32) -> i32 {
    %c0_i32 = arith.constant 0 : i32
    %c0_i32_0 = arith.constant 0 : i32
    return %c0_i32 : i32
  }
  func.func @transform_1(%arg0: i32) -> (i32, i32, i32) {
    %c0_i32 = arith.constant 0 : i32
    %c0_i32_0 = arith.constant 0 : i32
    %c0_i32_1 = arith.constant 0 : i32
    return %c0_i32, %arg0, %c0_i32_0 : i32, i32, i32
  }
  func.func @transform_2(%arg0: i32) -> (i32, i32, i32) {
    %c0_i32 = arith.constant 0 : i32
    %c0_i32_0 = arith.constant 0 : i32
    %c0_i32_1 = arith.constant 0 : i32
    return %c0_i32, %arg0, %c0_i32_0 : i32, i32, i32
  }
}

</mosaic_0001>

<llo_original>
// kernel: predictor_forward.1
$region0: #{predictor_forward.1}
  #allocation0 [shape = 'u32[]', space=smem, size = 0x4, offset = 0x4, fixed_abs, tag = 'smem constant byte address 0x4 - core index']
  #allocation1 [shape = 'u32[144,128]{1,0:T(1,128)}', space=vmem, size = 0x12000, scoped, tag = 'internal scratch']
  %s0 = inlined_call_operand.vmem [shape: f32[3], index: 0, kind: input, shape index: {}]
  %s1 = inlined_call_operand.vmem [shape: f32[2,8,128], index: 1, kind: input, shape index: {}]
  %s2 = inlined_call_operand.vmem [shape: f32[1,8,128], index: 2, kind: output, shape index: {}]
  %s3 = sld [smem:[#allocation0]]
  $region22: #{predictor_forward.1} parent=0
    _
  %s5 = ssub.s32 1, %s3
  %s6 = scalar_select 0, %s5, %s3
  $region1: #{predictor_forward.1} parent=0
    #allocation2 [shape = 'u8[512]{0}', space=smem, size = 0x200, scoped, tag = 'input window, operand 0, single buffered']
    #allocation3 [shape = 's32[1]{0}', space=sflag, size = 0x4, scoped, tag = 'scoped memory for predictor_forward.1']
    %7 = vsyncpa [#allocation3], 0
    // Predicated region
    $region2: #{predictor_forward.1} parent=1 // pred_check
      _
    $region3: #{predictor_forward.1} parent=1 // pred_check_branch
      %9 = sbr.rel (0) target = $region5
    $region4: #{predictor_forward.1} parent=1 // pred_region
      %s11 = ssub.s32 16, 16
      %12 = vsyncadd [#allocation3], %s11
      %s14 = sshll.u32 %s0, 4
      %s15 = int_to_ptr.vmem [resolvable:$true] %s14
      %17 = dma.vmem_to_smem %s15, 16, [#allocation2], [#allocation3]
    $region5: #{predictor_forward.1} parent=1 // pred_fallthru
      _
    // Predicated region
    $region6: #{predictor_forward.1} parent=1 // pred_check
      _
    $region7: #{predictor_forward.1} parent=1 // pred_check_branch
      %19 = sbr.rel (0) target = $region9
    $region8: #{predictor_forward.1} parent=1 // pred_region
      _
    $region9: #{predictor_forward.1} parent=1 // pred_fallthru
      _
    // Predicated region
    $region10: #{predictor_forward.1} parent=1 // pred_check
      _
    $region11: #{predictor_forward.1} parent=1 // pred_check_branch
      %21 = sbr.rel (0) target = $region13
    $region12: #{predictor_forward.1} parent=1 // pred_region
      %22 = dma.done [#allocation3], 16
    $region13: #{predictor_forward.1} parent=1 // pred_fallthru
      _
    %23 = sfence
    %s24 = sld [smem:[#allocation2]]
    %s25 = sld [smem:[#allocation2 + $0x1]]
    %s26 = sld [smem:[#allocation2 + $0x2]]
    %v27 = vld [vmem:[%s1] sm:$0xff]
    %v28 = vstv %s24
    %v29 = vmul.f32 %v28, %v27
    %s30 = scalar_lea.vmem %s1, 8
    %v31 = vld [vmem:[%s30] sm:$0xff]
    %v32 = vstv %s25
    %v33 = vmul.f32 %v32, %v31
    %v34 = vadd.f32 %v29, %v33
    %v35 = vstv %s26
    %v36 = vadd.f32 %v34, %v35
    %37 = vst [vmem:[%s2] sm:$0xff] %v36
    // Predicated region
    $region14: #{predictor_forward.1} parent=1 // pred_check
      _
    $region15: #{predictor_forward.1} parent=1 // pred_check_branch
      %39 = sbr.rel (0) target = $region17
    $region16: #{predictor_forward.1} parent=1 // pred_region
      _
    $region17: #{predictor_forward.1} parent=1 // pred_fallthru
      _
    // Predicated region
    $region18: #{predictor_forward.1} parent=1 // pred_check
      _
    $region19: #{predictor_forward.1} parent=1 // pred_check_branch
      %41 = sbr.rel (0) target = $region21
    $region20: #{predictor_forward.1} parent=1 // pred_region
      _
    $region21: #{predictor_forward.1} parent=1 // pred_fallthru
      _
    %42 = vsyncpa [#allocation3], 1

</llo_original>
